<compile_context>
chip_gen: v7x
topology: tpu7x:2x2x1
jax: 0.10.0
libtpu: 0.0.40
codegen_flags: <defaults>
</compile_context>

<pallas_src>
import jax
import jax.numpy as jnp
from jax.experimental import pallas as pl
from jax.experimental.pallas import tpu as pltpu


def _round_up(x, m):
    return (x + m - 1) // m * m


def _softplus(x):
    # numerically stable softplus, pure elementwise (VPU/EUP friendly)
    return jnp.maximum(x, 0.0) + jnp.log1p(jnp.exp(-jnp.abs(x)))


def _edge_kernel(u_min_ref, v_min_ref, side_ref, prob_ref, losspart_ref):
    """Per-edge-tile kernel (edges on lanes, embedding dim on sublanes).

    u_min_ref / v_min_ref : (D, T)   box min corners (bf16 or f32 stream)
    side_ref              : (4, T)   rows = [u_off, v_off, ground_truth, valid]
    prob_ref              : (1, T)   edge probability (sigmoid of score)
    losspart_ref          : (1, 128) per-tile lane-partial loss sums
    """
    u_min = u_min_ref[...].astype(jnp.float32)          # (D, T)
    v_min = v_min_ref[...].astype(jnp.float32)          # (D, T)
    side = side_ref[...]                                 # (4, T) f32
    u_off = side[0:1, :]                                 # (1, T)
    v_off = side[1:2, :]
    y = side[2:3, :]
    valid = side[3:4, :]

    # box corners: max corner = min corner + softplus(offset), broadcast over D
    u_max = u_min + _softplus(u_off)
    v_max = v_min + _softplus(v_off)

    # per-dim overlap of the two boxes, relu-clamped             (D, T)
    overlap = jnp.maximum(
        jnp.minimum(u_max, v_max) - jnp.maximum(u_min, v_min), 0.0)

    # edge score: reduce over embedding dim (sublane / XLU)      (1, T)
    score = jnp.sum(overlap, axis=0, keepdims=True)

    # edge probability (lane-dense store)
    prob_ref[...] = jax.nn.sigmoid(score)

    # score >= 0 (sum of relu'd overlaps), so stable BCE-with-logits
    # simplifies to: s*(1-y) + log1p(exp(-s)).  Mask out padded edges.
    loss = (score * (1.0 - y) + jnp.log1p(jnp.exp(-score))) * valid   # (1, T)

    # per-tile partial sums: fold the T lanes into 128 lane partials with
    # aligned 128-wide slices (no relayout), store lane-dense.
    t = loss.shape[1]
    acc = loss[:, 0:128]
    for k in range(1, t // 128):
        acc = acc + loss[:, k * 128:(k + 1) * 128]
    losspart_ref[...] = acc


def _edge_loss_pallas(u_min_t, v_min_t, side, tile):
    """u_min_t/v_min_t: (D, E_pad), side: (4, E_pad); E_pad % tile == 0."""
    D, e_pad = u_min_t.shape
    num_tiles = e_pad // tile

    emb_spec = pl.BlockSpec((D, tile), lambda i: (0, i))
    side_spec = pl.BlockSpec((4, tile), lambda i: (0, i))
    prob_spec = pl.BlockSpec((1, tile), lambda i: (0, i))
    part_spec = pl.BlockSpec((1, 128), lambda i: (0, i))

    prob_row, loss_parts = pl.pallas_call(
        _edge_kernel,
        out_shape=(jax.ShapeDtypeStruct((1, e_pad), jnp.float32),
                   jax.ShapeDtypeStruct((1, num_tiles * 128), jnp.float32)),
        grid=(num_tiles,),
        in_specs=[emb_spec, emb_spec, side_spec],
        out_specs=(prob_spec, part_spec),
        compiler_params=pltpu.CompilerParams(
            dimension_semantics=("parallel",)),
    )(u_min_t, v_min_t, side)
    return prob_row, loss_parts


def bipartite_forward(embs, offset_embs, batch, *, tile_e=1024,
                      stream_dtype=jnp.bfloat16):
    """JAX equivalent of BipartiteModel.forward.

    embs        : (n_nodes, dim)  float32 parameter
    offset_embs : (n_nodes, 1)    float32 parameter
    batch       : {'pos': (pos_u, pos_v), 'neg': ([neg_u_chunks], [neg_v_chunks])}
    returns (loss: scalar f32, edge_prob: (E,) f32, ground_truth: (E,) f32)
    """
    pos_edge_u, pos_edge_v = batch['pos']
    neg_edge_u = jnp.concatenate(batch['neg'][0])
    neg_edge_v = jnp.concatenate(batch['neg'][1])

    edge_u = jnp.concatenate([pos_edge_u, neg_edge_u])
    edge_v = jnp.concatenate([pos_edge_v, neg_edge_v])

    n_pos = pos_edge_u.shape[0]
    n_neg = neg_edge_u.shape[0]
    E = n_pos + n_neg
    D = embs.shape[1]

    ground_truth = jnp.concatenate(
        [jnp.ones((n_pos,), jnp.float32), jnp.zeros((n_neg,), jnp.float32)])

    # ---- tile sizing: large, lane-dense (multiple of 128), VMEM-safe --------
    itemsize = jnp.dtype(stream_dtype).itemsize
    # rough double-buffered per-edge footprint: 2 emb tiles + side + outputs
    per_edge = 2 * (2 * D * itemsize + 4 * 4 + 4 + 4)
    budget = 8 * 1024 * 1024          # big headroom vs v7x's 64 MiB VMEM
    max_tile = max(128, (budget // per_edge) // 128 * 128)
    tile = int(min(tile_e, max_tile, _round_up(E, 128)))
    e_pad = _round_up(E, tile)
    pad = e_pad - E

    # ---- gather + transpose glue (XLA); edges end up on the lane axis -------
    edge_u_p = jnp.pad(edge_u, (0, pad))          # pad with node 0 (masked out)
    edge_v_p = jnp.pad(edge_v, (0, pad))

    embs_t = embs.T.astype(stream_dtype)          # (D, n_nodes) memory format
    u_min_t = embs_t[:, edge_u_p]                 # (D, E_pad)
    v_min_t = embs_t[:, edge_v_p]                 # (D, E_pad)

    off = offset_embs[:, 0].astype(jnp.float32)   # (n_nodes,)
    u_off = off[edge_u_p]                         # (E_pad,)
    v_off = off[edge_v_p]
    gt_p = jnp.pad(ground_truth, (0, pad))
    valid = jnp.pad(jnp.ones((E,), jnp.float32), (0, pad))
    side = jnp.stack([u_off, v_off, gt_p, valid], axis=0)   # (4, E_pad) f32

    # ---- Pallas kernel: per-edge score/prob + masked per-tile loss sums -----
    prob_row, loss_parts = _edge_loss_pallas(u_min_t, v_min_t, side, tile)

    loss = jnp.sum(loss_parts) / jnp.float32(E)   # mean over REAL edges only
    edge_prob = prob_row[0, :E]
    return loss, edge_prob, ground_truth


if __name__ == "__main__":
    key = jax.random.PRNGKey(0)
    k_emb, k_off, k_pu, k_pv, k_nu, k_nv = jax.random.split(key, 6)

    n_nodes = 64
    dim = 32
    n_pos = 8           # positive edges
    n_neg_chunk = 4     # two negative chunks of 4 -> 8 negative edges

    # setup(): uniform(-1, 1) init, matching torch.rand * (h - l) + l
    embs = jax.random.uniform(k_emb, (n_nodes, dim), jnp.float32,
                              minval=-1.0, maxval=1.0)
    offset_embs = jax.random.uniform(k_off, (n_nodes, 1), jnp.float32,
                                     minval=-1.0, maxval=1.0)

    pos_u = jax.random.randint(k_pu, (n_pos,), 0, n_nodes, jnp.int32)
    pos_v = jax.random.randint(k_pv, (n_pos,), 0, n_nodes, jnp.int32)
    neg_u = [jax.random.randint(jax.random.fold_in(k_nu, i),
                                (n_neg_chunk,), 0, n_nodes, jnp.int32)
             for i in range(2)]
    neg_v = [jax.random.randint(jax.random.fold_in(k_nv, i),
                                (n_neg_chunk,), 0, n_nodes, jnp.int32)
             for i in range(2)]

    batch = {'pos': (pos_u, pos_v), 'neg': (neg_u, neg_v)}

    loss, edge_prob, ground_truth = jax.block_until_ready(
        bipartite_forward(embs, offset_embs, batch))

    n_edges = n_pos + 2 * n_neg_chunk
    assert loss.shape == ()
    assert edge_prob.shape == (n_edges,)
    assert ground_truth.shape == (n_edges,)
    assert bool(jnp.isfinite(loss))
    assert bool(jnp.all(jnp.isfinite(edge_prob)))
    print("KERNEL_OK")
</pallas_src>

<mosaic_0001>
module attributes {stable_mosaic.version = 11 : i64} {
  func.func @_edge_kernel(%arg0: i32, %arg1: memref<32x128xbf16, #tpu.memory_space<vmem>>, %arg2: memref<32x128xbf16, #tpu.memory_space<vmem>>, %arg3: memref<4x128xf32, #tpu.memory_space<vmem>>, %arg4: memref<1x128xf32, #tpu.memory_space<vmem>>, %arg5: memref<1x128xf32, #tpu.memory_space<vmem>>) attributes {dimension_semantics = [#tpu.dimension_semantics<parallel>], iteration_bounds = array<i64: 1>, scalar_prefetch = 0 : i64, scratch_operands = 0 : i64, tpu.core_type = #tpu.core_type<tc>, window_params = [{transform_indices = @transform_0, window_bounds = array<i64: 32, 128>}, {transform_indices = @transform_1, window_bounds = array<i64: 32, 128>}, {transform_indices = @transform_2, window_bounds = array<i64: 4, 128>}, {transform_indices = @transform_3, window_bounds = array<i64: 1, 128>}, {transform_indices = @transform_4, window_bounds = array<i64: 1, 128>}]} {
    %c0 = arith.constant 0 : index
    %c0_0 = arith.constant 0 : index
    %0 = vector.load %arg1[%c0, %c0_0] : memref<32x128xbf16, #tpu.memory_space<vmem>>, vector<32x128xbf16>
    %1 = arith.extf %0 : vector<32x128xbf16> to vector<32x128xf32>
    %c0_1 = arith.constant 0 : index
    %c0_2 = arith.constant 0 : index
    %2 = vector.load %arg2[%c0_1, %c0_2] : memref<32x128xbf16, #tpu.memory_space<vmem>>, vector<32x128xbf16>
    %3 = arith.extf %2 : vector<32x128xbf16> to vector<32x128xf32>
    %c0_3 = arith.constant 0 : index
    %c0_4 = arith.constant 0 : index
    %4 = vector.load %arg3[%c0_3, %c0_4] : memref<4x128xf32, #tpu.memory_space<vmem>>, vector<4x128xf32>
    %5 = vector.extract_strided_slice %4 {offsets = [0, 0], sizes = [1, 128], strides = [1, 1]} : vector<4x128xf32> to vector<1x128xf32>
    %6 = vector.extract_strided_slice %4 {offsets = [1, 0], sizes = [1, 128], strides = [1, 1]} : vector<4x128xf32> to vector<1x128xf32>
    %7 = vector.extract_strided_slice %4 {offsets = [2, 0], sizes = [1, 128], strides = [1, 1]} : vector<4x128xf32> to vector<1x128xf32>
    %8 = vector.extract_strided_slice %4 {offsets = [3, 0], sizes = [1, 128], strides = [1, 1]} : vector<4x128xf32> to vector<1x128xf32>
    %cst = arith.constant 0.000000e+00 : f32
    %9 = vector.broadcast %cst : f32 to vector<1x128xf32>
    %10 = arith.maximumf %5, %9 : vector<1x128xf32>
    %11 = math.absf %5 : vector<1x128xf32>
    %cst_5 = arith.constant 0.000000e+00 : f32
    %12 = vector.broadcast %cst_5 : f32 to vector<1x128xf32>
    %13 = arith.subf %12, %11 : vector<1x128xf32>
    %14 = math.exp %13 : vector<1x128xf32>
    %15 = math.log1p %14 : vector<1x128xf32>
    %16 = arith.addf %10, %15 : vector<1x128xf32>
    %17 = vector.broadcast %16 : vector<1x128xf32> to vector<32x128xf32>
    %18 = arith.addf %1, %17 : vector<32x128xf32>
    %cst_6 = arith.constant 0.000000e+00 : f32
    %19 = vector.broadcast %cst_6 : f32 to vector<1x128xf32>
    %20 = arith.maximumf %6, %19 : vector<1x128xf32>
    %21 = math.absf %6 : vector<1x128xf32>
    %cst_7 = arith.constant 0.000000e+00 : f32
    %22 = vector.broadcast %cst_7 : f32 to vector<1x128xf32>
    %23 = arith.subf %22, %21 : vector<1x128xf32>
    %24 = math.exp %23 : vector<1x128xf32>
    %25 = math.log1p %24 : vector<1x128xf32>
    %26 = arith.addf %20, %25 : vector<1x128xf32>
    %27 = vector.broadcast %26 : vector<1x128xf32> to vector<32x128xf32>
    %28 = arith.addf %3, %27 : vector<32x128xf32>
    %29 = arith.minimumf %18, %28 : vector<32x128xf32>
    %30 = arith.maximumf %1, %3 : vector<32x128xf32>
    %31 = arith.subf %29, %30 : vector<32x128xf32>
    %cst_8 = arith.constant 0.000000e+00 : f32
    %32 = vector.broadcast %cst_8 : f32 to vector<32x128xf32>
    %33 = arith.maximumf %31, %32 : vector<32x128xf32>
    %cst_9 = arith.constant dense<0.000000e+00> : vector<128xf32>
    %34 = vector.multi_reduction <add>, %33, %cst_9 [0] : vector<32x128xf32> to vector<128xf32>
    %35 = vector.shape_cast %34 : vector<128xf32> to vector<1x128xf32>
    %36 = arith.negf %35 : vector<1x128xf32>
    %37 = math.exp %36 : vector<1x128xf32>
    %cst_10 = arith.constant 1.000000e+00 : f32
    %38 = vector.broadcast %cst_10 : f32 to vector<1x128xf32>
    %39 = arith.addf %38, %37 : vector<1x128xf32>
    %40 = arith.divf %38, %39 : vector<1x128xf32>
    %c0_11 = arith.constant 0 : index
    %c0_12 = arith.constant 0 : index
    %41 = vector.load %arg4[%c0_11, %c0_12] : memref<1x128xf32, #tpu.memory_space<vmem>>, vector<1x128xf32>
    tpu.vector_store %arg4[%c0_11, %c0_12], %40 {strides = array<i32>} : memref<1x128xf32, #tpu.memory_space<vmem>>, vector<1x128xf32>,
    %cst_13 = arith.constant 1.000000e+00 : f32
    %42 = vector.broadcast %cst_13 : f32 to vector<1x128xf32>
    %43 = arith.subf %42, %7 : vector<1x128xf32>
    %44 = arith.mulf %35, %43 : vector<1x128xf32>
    %cst_14 = arith.constant 0.000000e+00 : f32
    %45 = vector.broadcast %cst_14 : f32 to vector<1x128xf32>
    %46 = arith.subf %45, %35 : vector<1x128xf32>
    %47 = math.exp %46 : vector<1x128xf32>
    %48 = math.log1p %47 : vector<1x128xf32>
    %49 = arith.addf %44, %48 : vector<1x128xf32>
    %50 = arith.mulf %49, %8 : vector<1x128xf32>
    %c0_15 = arith.constant 0 : index
    %c0_16 = arith.constant 0 : index
    %51 = vector.load %arg5[%c0_15, %c0_16] : memref<1x128xf32, #tpu.memory_space<vmem>>, vector<1x128xf32>
    tpu.vector_store %arg5[%c0_15, %c0_16], %50 {strides = array<i32>} : memref<1x128xf32, #tpu.memory_space<vmem>>, vector<1x128xf32>,
    return
  }
  func.func @transform_0(%arg0: i32) -> (i32, i32) {
    %c0_i32 = arith.constant 0 : i32
    %c0_i32_0 = arith.constant 0 : i32
    return %c0_i32, %arg0 : i32, i32
  }
  func.func @transform_1(%arg0: i32) -> (i32, i32) {
    %c0_i32 = arith.constant 0 : i32
    %c0_i32_0 = arith.constant 0 : i32
    return %c0_i32, %arg0 : i32, i32
  }
  func.func @transform_2(%arg0: i32) -> (i32, i32) {
    %c0_i32 = arith.constant 0 : i32
    %c0_i32_0 = arith.constant 0 : i32
    return %c0_i32, %arg0 : i32, i32
  }
  func.func @transform_3(%arg0: i32) -> (i32, i32) {
    %c0_i32 = arith.constant 0 : i32
    %c0_i32_0 = arith.constant 0 : i32
    return %c0_i32, %arg0 : i32, i32
  }
  func.func @transform_4(%arg0: i32) -> (i32, i32) {
    %c0_i32 = arith.constant 0 : i32
    %c0_i32_0 = arith.constant 0 : i32
    return %c0_i32, %arg0 : i32, i32
  }
}

</mosaic_0001>

<llo_original>
// kernel: tpu_custom_call.1
$region0: #{tpu_custom_call.1}
  #allocation0 [shape = 'u32[]', space=smem, size = 0x4, offset = 0x4, fixed_abs, tag = 'smem constant byte address 0x4 - core index']
  #allocation1 [shape = 'u32[144,128]{1,0:T(1,128)}', space=vmem, size = 0x12000, scoped, tag = 'internal scratch']
  %s0 = inlined_call_operand.hbm [shape: bf16[32,128], index: 0, kind: input, shape index: {}]
  %s1 = inlined_call_operand.hbm [shape: bf16[32,128], index: 1, kind: input, shape index: {}]
  %s2 = inlined_call_operand.vmem [shape: f32[4,128], index: 2, kind: input, shape index: {}]
  %s3 = inlined_call_operand.hbm [shape: f32[1,128], index: 3, kind: output, shape index: {0}]
  %s4 = inlined_call_operand.hbm [shape: f32[1,128], index: 4, kind: output, shape index: {1}]
  %5 = xla_tuple %s3, %s4
  %s6 = sld [smem:[#allocation0]]
  $region38: #{tpu_custom_call.1} parent=0
    _
  %s8 = ssub.s32 1, %s6
  %s9 = scalar_select 0, %s8, %s6
  $region1: #{tpu_custom_call.1} parent=0
    #allocation2 [shape = 'u8[8192]{0}', space=vmem, size = 0x2000, scoped, tag = 'input window, operand 0, single buffered']
    #allocation3 [shape = 's32[1]{0}', space=sflag, size = 0x4, scoped, tag = 'scoped memory for tpu_custom_call.1']
    #allocation4 [shape = 's32[1]{0}', space=sflag, size = 0x4, scoped, tag = 'scoped memory for tpu_custom_call.1']
    #allocation5 [shape = 'u8[8192]{0}', space=vmem, size = 0x2000, scoped, tag = 'input window, operand 1, single buffered']
    #allocation6 [shape = 's32[1]{0}', space=sflag, size = 0x4, scoped, tag = 'scoped memory for tpu_custom_call.1']
    #allocation7 [shape = 'u8[512]{0}', space=vmem, size = 0x400, scoped, tag = 'output window, operand 0, single buffered']
    #allocation8 [shape = 'u8[512]{0}', space=vmem, size = 0x400, scoped, tag = 'output window, operand 1, single buffered']
    #allocation9 [shape = 's32[1]{0}', space=sflag, size = 0x4, scoped, tag = 'scoped memory for tpu_custom_call.1']
    %10 = vsyncpa [#allocation3], 0
    %11 = vsyncpa [#allocation6], 0
    %12 = vsyncpa [#allocation4], 0
    %13 = vsyncpa [#allocation9], 0
    // Predicated region
    $region2: #{tpu_custom_call.1} parent=1 // pred_check
      _
    $region3: #{tpu_custom_call.1} parent=1 // pred_check_branch
      %15 = sbr.rel (0) target = $region5
    $region4: #{tpu_custom_call.1} parent=1 // pred_region
      %s17 = ssub.s32 256, 256
      %18 = vsyncadd [#allocation3], %s17
      %s19 = sshll.u32 [#allocation2], 4
      %s20 = int_to_ptr.vmem [resolvable:$true] %s19
      %25 = dma.hbm_to_vmem [thread:$0]  %s0, 256, %s20, [#allocation3], 64, 64, 4
    $region5: #{tpu_custom_call.1} parent=1 // pred_fallthru
      _
    // Predicated region
    $region6: #{tpu_custom_call.1} parent=1 // pred_check
      _
    $region7: #{tpu_custom_call.1} parent=1 // pred_check_branch
      %27 = sbr.rel (0) target = $region9
    $region8: #{tpu_custom_call.1} parent=1 // pred_region
      %s29 = ssub.s32 256, 256
      %30 = vsyncadd [#allocation6], %s29
      %s31 = sshll.u32 [#allocation5], 4
      %s32 = int_to_ptr.vmem [resolvable:$true] %s31
      %37 = dma.hbm_to_vmem [thread:$0]  %s1, 256, %s32, [#allocation6], 64, 64, 4
    $region9: #{tpu_custom_call.1} parent=1 // pred_fallthru
      _
    // Predicated region
    $region10: #{tpu_custom_call.1} parent=1 // pred_check
      _
    $region11: #{tpu_custom_call.1} parent=1 // pred_check_branch
      %39 = sbr.rel (0) target = $region13
    $region12: #{tpu_custom_call.1} parent=1 // pred_region
      _
    $region13: #{tpu_custom_call.1} parent=1 // pred_fallthru
      _
    // Predicated region
    $region14: #{tpu_custom_call.1} parent=1 // pred_check
      _
    $region15: #{tpu_custom_call.1} parent=1 // pred_check_branch
      %41 = sbr.rel (0) target = $region17
    $region16: #{tpu_custom_call.1} parent=1 // pred_region
      %42 = dma.done [#allocation3], 256
    $region17: #{tpu_custom_call.1} parent=1 // pred_fallthru
      _
    // Predicated region
    $region18: #{tpu_custom_call.1} parent=1 // pred_check
      _
    $region19: #{tpu_custom_call.1} parent=1 // pred_check_branch
      %44 = sbr.rel (0) target = $region21
    $region20: #{tpu_custom_call.1} parent=1 // pred_region
      %45 = dma.done [#allocation6], 256
    $region21: #{tpu_custom_call.1} parent=1 // pred_fallthru
      _
    %v46 = vld [vmem:[#allocation2] sm:$0xf]
    %v47 = vld [vmem:[#allocation2 + $0x4] sm:$0xf]
    %v48 = vld [vmem:[#allocation2 + $0x8] sm:$0xf]
    %v49 = vld [vmem:[#allocation2 + $0xc] sm:$0xf]
    %v50 = vunpack.c.l.bf16 %v46
    %v51 = vunpack.c.l.bf16 %v47
    %v52 = vunpack.c.l.bf16 %v48
    %v53 = vunpack.c.l.bf16 %v49
    %v54 = vld [vmem:[#allocation5] sm:$0xf]
    %v55 = vld [vmem:[#allocation5 + $0x4] sm:$0xf]
    %v56 = vld [vmem:[#allocation5 + $0x8] sm:$0xf]
    %v57 = vld [vmem:[#allocation5 + $0xc] sm:$0xf]
    %v58 = vunpack.c.l.bf16 %v54
    %v59 = vunpack.c.l.bf16 %v55
    %v60 = vunpack.c.l.bf16 %v56
    %v61 = vunpack.c.l.bf16 %v57
    %v62 = vld [vmem:[%s2] sm:$0xf]
    %v63 = vmax.f32 %v62, 0.0
    %v64 = vand.u32 2147483647, %v62
    %v65 = vsub.f32 0.0, %v64
    %v66 = vmul.f32 %v65, 1.442695
    %v67 = vpow.pop %v66
    %v68 = vadd.f32 %v67, 1.0
    %v69 = vlog2.pop %v68
    %v70 = vmul.f32 %v69, 0.6931472
    %v71 = vmul.f32 -0.5, %v67
    %v72 = vadd.f32 %v71, 1.0
    %v73 = vmul.f32 %v72, %v67
    %v74 = vand.u32 2147483647, %v67
    %vm75 = vcmp.lt.f32.partialorder %v74, 0.0004427343
    %v76 = vsel %vm75, %v73, %v70
    %v77 = vadd.f32 %v63, %v76
    %v78 = vlaneseq
    %v79 = vshrl.u32 %v78, 7
    %v80 = vsub.s32 0, %v79
    %v81 = vrot.slane %v77, %v80
    %v82 = vadd.f32 %v50, %v81
    %v83 = vadd.f32 %v51, %v81
    %v84 = vadd.f32 %v52, %v81
    %v85 = vadd.f32 %v53, %v81
    %v86 = vlaneseq
    %v87 = vshrl.u32 %v86, 7
    %v88 = vsub.s32 1, %v87
    %v89 = vrot.slane %v77, %v88
    %v90 = vadd.f32 %v58, %v89
    %v91 = vadd.f32 %v59, %v89
    %v92 = vadd.f32 %v60, %v89
    %v93 = vadd.f32 %v61, %v89
    %v94 = vmin.f32 %v82, %v90
    %v95 = vmin.f32 %v83, %v91
    %v96 = vmin.f32 %v84, %v92
    %v97 = vmin.f32 %v85, %v93
    %v98 = vmax.f32 %v50, %v58
    %v99 = vmax.f32 %v51, %v59
    %v100 = vmax.f32 %v52, %v60
    %v101 = vmax.f32 %v53, %v61
    %v102 = vsub.f32 %v94, %v98
    %v103 = vsub.f32 %v95, %v99
    %v104 = vsub.f32 %v96, %v100
    %v105 = vsub.f32 %v97, %v101
    %v106 = vmax.f32 %v102, 0.0
    %v107 = vmax.f32 %v103, 0.0
    %v108 = vmax.f32 %v104, 0.0
    %v109 = vmax.f32 %v105, 0.0
    %v110 = vadd.f32 %v106, %v107
    %v111 = vadd.f32 %v110, %v108
    %v112 = vadd.f32 %v111, %v109
    %v113 = vrot.slane %v112, 4
    %v114 = vadd.f32 %v112, %v113
    %v115 = vrot.slane %v114, 2
    %v116 = vadd.f32 %v114, %v115
    %v117 = vrot.slane %v116, 1
    %v118 = vadd.f32 %v116, %v117
    %v119 = vxor.u32 %v118, 2147483648
    %v120 = vmul.f32 %v119, 1.442695
    %v121 = vpow.pop %v120
    %v122 = vadd.f32 %v121, 1.0
    %v123 = vrcp.pop %v122
    %v124 = vmul.f32 1.0, %v123
    %125 = vst [vmem:[#allocation7] sm:$0x1] %v124
    %v126 = vsub.f32 1.0, %v62
    %v127 = vmul.f32 %v118, %v126
    %v128 = vsub.f32 0.0, %v118
    %v129 = vmul.f32 %v128, 1.442695
    %v130 = vpow.pop %v129
    %v131 = vadd.f32 %v130, 1.0
    %v132 = vlog2.pop %v131
    %v133 = vmul.f32 %v132, 0.6931472
    %v134 = vmul.f32 -0.5, %v130
    %v135 = vadd.f32 %v134, 1.0
    %v136 = vmul.f32 %v135, %v130
    %v137 = vand.u32 2147483647, %v130
    %vm138 = vcmp.lt.f32.partialorder %v137, 0.0004427343
    %v139 = vsel %vm138, %v136, %v133
    %v140 = vadd.f32 %v127, %v139
    %v142 = vrot.slane %v62, 1
    %v144 = vmul.f32 %v140, %v142
    %145 = vst [vmem:[#allocation8 - $0x2] sm:$0x4] %v144
    // Predicated region
    $region22: #{tpu_custom_call.1} parent=1 // pred_check
      _
    $region23: #{tpu_custom_call.1} parent=1 // pred_check_branch
      %147 = sbr.rel (0) target = $region25
    $region24: #{tpu_custom_call.1} parent=1 // pred_region
      %s149 = ssub.s32 16, 16
      %150 = vsyncadd [#allocation4], %s149
      %s152 = sshll.u32 [#allocation7], 4
      %s153 = int_to_ptr.vmem [resolvable:$true] %s152
      %155 = dma.vmem_to_hbm [thread:$0]  %s153, 16, %s3, [#allocation4]
    $region25: #{tpu_custom_call.1} parent=1 // pred_fallthru
      _
    // Predicated region
    $region26: #{tpu_custom_call.1} parent=1 // pred_check
      _
    $region27: #{tpu_custom_call.1} parent=1 // pred_check_branch
      %157 = sbr.rel (0) target = $region29
    $region28: #{tpu_custom_call.1} parent=1 // pred_region
      %s159 = ssub.s32 16, 16
      %160 = vsyncadd [#allocation9], %s159
      %s162 = sshll.u32 [#allocation8], 4
      %s163 = int_to_ptr.vmem [resolvable:$true] %s162
      %165 = dma.vmem_to_hbm [thread:$0]  %s163, 16, %s4, [#allocation9]
    $region29: #{tpu_custom_call.1} parent=1 // pred_fallthru
      _
    // Predicated region
    $region30: #{tpu_custom_call.1} parent=1 // pred_check
      _
    $region31: #{tpu_custom_call.1} parent=1 // pred_check_branch
      %167 = sbr.rel (0) target = $region33
    $region32: #{tpu_custom_call.1} parent=1 // pred_region
      %168 = dma.done [#allocation4], 16
    $region33: #{tpu_custom_call.1} parent=1 // pred_fallthru
      _
    // Predicated region
    $region34: #{tpu_custom_call.1} parent=1 // pred_check
      _
    $region35: #{tpu_custom_call.1} parent=1 // pred_check_branch
      %170 = sbr.rel (0) target = $region37
    $region36: #{tpu_custom_call.1} parent=1 // pred_region
      %171 = dma.done [#allocation9], 16
    $region37: #{tpu_custom_call.1} parent=1 // pred_fallthru
      _
    %172 = vsyncpa [#allocation3], 1
    %173 = vsyncpa [#allocation6], 1
    %174 = vsyncpa [#allocation4], 1
    %175 = vsyncpa [#allocation9], 1

</llo_original>
